<compile_context>
chip_gen: v7x
topology: tpu7x:2x2x1
jax: 0.10.0
libtpu: 0.0.40
codegen_flags: <defaults>
</compile_context>

<pallas_src>
import math
import functools

import jax
import jax.numpy as jnp
from jax import lax
from jax.experimental import pallas as pl
from jax.experimental.pallas import tpu as pltpu

# ---- config (small, consistent with BertConfig fields used in __init__) ----
BATCH = 2
SEQ = 8
HIDDEN = 32
NUM_HEADS = 4
HEAD_DIM = HIDDEN // NUM_HEADS


def _sdpa_kernel(x_ref, wqkv_ref, bqkv_ref, mask_ref, o_ref, *, num_heads):
    """Whole problem in a single grid step.

    x_ref:    (B*S, H)      flattened hidden states
    wqkv_ref: (H, 3H)       fused [Wq | Wk | Wv], laid out (in, out)
    bqkv_ref: (1, 3H)       fused [bq | bk | bv]
    mask_ref: (B*S, B*S)    block-diagonal additive bias (-1e30 off the diagonal blocks)
    o_ref:    (B*S, H)      output (== out.transpose(1,2).flatten(2) in torch, flattened)
    """
    H = x_ref.shape[1]
    d = H // num_heads
    scale = 1.0 / math.sqrt(d)

    # One fused QKV projection for the whole batch: (B*S, H) @ (H, 3H).
    x = x_ref[...]
    qkv = (jnp.dot(x, wqkv_ref[...], preferred_element_type=jnp.float32)
           + bqkv_ref[...])                           # (B*S, 3H)

    bias = mask_ref[...].astype(jnp.float32)          # (B*S, B*S) block-diag bias

    head_outs = []
    for h in range(num_heads):                        # static head loop (nh=4)
        c0 = h * d
        qh = qkv[:, c0:c0 + d]                        # (B*S, d)
        kh = qkv[:, H + c0:H + c0 + d]                # (B*S, d)
        vh = qkv[:, 2 * H + c0:2 * H + c0 + d]        # (B*S, d)

        # Contract on the head dim of both operands -> no explicit kh.T.
        # Cross-batch blocks get -1e30 bias -> exp underflows to exactly 0,
        # so one softmax over B*S keys == per-batch softmax over S keys.
        s = lax.dot_general(
            qh, kh, (((1,), (1,)), ((), ())),
            preferred_element_type=jnp.float32) * scale + bias
        m = jnp.max(s, axis=-1, keepdims=True)
        p = jnp.exp(s - m)
        l = jnp.sum(p, axis=-1, keepdims=True)
        oh = jnp.dot(p, vh, preferred_element_type=jnp.float32)
        # Row-wise normalization folded in after PV; multiply, not divide.
        head_outs.append(oh * pl.reciprocal(l, approx=False))

    # Single full-slab store: (B*S, H), heads concatenated on the lane axis.
    o_ref[...] = jnp.concatenate(head_outs, axis=-1).astype(o_ref.dtype)


@jax.jit
def bert_sdpa(hidden_states, wq, bq, wk, bk, wv, bv, attention_mask):
    """hidden_states: (B, S, H) f32; weights (H, H) laid out (in, out);
    biases (H,); attention_mask (B, S, S) float (additive bias)."""
    B, S, H = hidden_states.shape
    BS = B * S

    w_qkv = jnp.concatenate([wq, wk, wv], axis=1)              # (H, 3H)
    b_qkv = jnp.concatenate([bq, bk, bv], axis=0).reshape(1, 3 * H)
    x2d = hidden_states.reshape(BS, H)

    # Wrapper-side layout plumbing: block-diagonal additive bias so the kernel
    # processes all batches in one attention per head.
    neg = jnp.float32(-1e30)
    mask_big = jnp.full((BS, BS), neg, dtype=jnp.float32)
    for b in range(B):                                         # static (B=2)
        mask_big = mask_big.at[b * S:(b + 1) * S, b * S:(b + 1) * S].set(
            attention_mask[b].astype(jnp.float32))

    kernel = functools.partial(_sdpa_kernel, num_heads=NUM_HEADS)
    out2d = pl.pallas_call(
        kernel,
        out_shape=jax.ShapeDtypeStruct((BS, H), hidden_states.dtype),
        grid_spec=pltpu.PrefetchScalarGridSpec(
            num_scalar_prefetch=0,
            grid=(1,),                                         # collapsed grid
            in_specs=[
                pl.BlockSpec((BS, H), lambda i: (0, 0)),       # x (flattened)
                pl.BlockSpec((H, 3 * H), lambda i: (0, 0)),    # fused W_qkv
                pl.BlockSpec((1, 3 * H), lambda i: (0, 0)),    # fused b_qkv
                pl.BlockSpec((BS, BS), lambda i: (0, 0)),      # block-diag mask bias
            ],
            out_specs=pl.BlockSpec((BS, H), lambda i: (0, 0)),
        ),
        compiler_params=pltpu.CompilerParams(
            dimension_semantics=("arbitrary",)),
    )(x2d, w_qkv, b_qkv, mask_big)
    return out2d.reshape(B, S, H)


def _reference(hidden_states, wq, bq, wk, bk, wv, bv, attention_mask):
    """Pure-JAX reference matching the PyTorch forward."""
    B, S, H = hidden_states.shape
    q = hidden_states @ wq + bq
    k = hidden_states @ wk + bk
    v = hidden_states @ wv + bv

    def split(t):  # (B, S, H) -> (B, nh, S, d)
        return t.reshape(B, S, NUM_HEADS, HEAD_DIM).transpose(0, 2, 1, 3)

    qh, kh, vh = split(q), split(k), split(v)
    bias = attention_mask.reshape(B, 1, S, S)
    s = jnp.einsum("bhqd,bhkd->bhqk", qh, kh) / math.sqrt(HEAD_DIM) + bias
    p = jax.nn.softmax(s, axis=-1)
    o = jnp.einsum("bhqk,bhkd->bhqd", p, vh)          # (B, nh, S, d)
    return o.transpose(0, 2, 1, 3).reshape(B, S, H)   # transpose(1,2).flatten(2)


if __name__ == "__main__":
    key = jax.random.PRNGKey(0)
    kx, kq, kbq, kk, kbk, kv, kbv = jax.random.split(key, 7)

    hidden_states = jax.random.normal(kx, (BATCH, SEQ, HIDDEN), dtype=jnp.float32)

    # Deterministic parameter init (nn.Linear-like scale), stored as (in, out).
    lim = 1.0 / math.sqrt(HIDDEN)
    wq = jax.random.uniform(kq, (HIDDEN, HIDDEN), jnp.float32, -lim, lim)
    bq = jax.random.uniform(kbq, (HIDDEN,), jnp.float32, -lim, lim)
    wk = jax.random.uniform(kk, (HIDDEN, HIDDEN), jnp.float32, -lim, lim)
    bk = jax.random.uniform(kbk, (HIDDEN,), jnp.float32, -lim, lim)
    wv = jax.random.uniform(kv, (HIDDEN, HIDDEN), jnp.float32, -lim, lim)
    bv = jax.random.uniform(kbv, (HIDDEN,), jnp.float32, -lim, lim)

    # Default mask in the module: ones(B, S, S), used as additive float bias.
    attention_mask = jnp.ones((BATCH, SEQ, SEQ), dtype=jnp.float32)

    out = bert_sdpa(hidden_states, wq, bq, wk, bk, wv, bv, attention_mask)
    out = jax.block_until_ready(out)

    ref = _reference(hidden_states, wq, bq, wk, bk, wv, bv, attention_mask)
    assert out.shape == (BATCH, SEQ, HIDDEN)
    assert jnp.allclose(out, ref, atol=1e-5, rtol=1e-5)

    print("KERNEL_OK")
</pallas_src>

<mosaic_0001>
module attributes {stable_mosaic.version = 11 : i64} {
  func.func @_sdpa_kernel(%arg0: i32, %arg1: memref<16x32xf32, #tpu.memory_space<vmem>>, %arg2: memref<32x96xf32, #tpu.memory_space<vmem>>, %arg3: memref<1x96xf32, #tpu.memory_space<vmem>>, %arg4: memref<16x16xf32, #tpu.memory_space<vmem>>, %arg5: memref<16x32xf32, #tpu.memory_space<vmem>>) attributes {dimension_semantics = [#tpu.dimension_semantics<arbitrary>], iteration_bounds = array<i64: 1>, scalar_prefetch = 0 : i64, scratch_operands = 0 : i64, tpu.core_type = #tpu.core_type<tc>, window_params = [{pipeline_mode = #tpu.pipeline_mode<synchronous>, transform_indices = @transform_0, window_bounds = array<i64: 16, 32>}, {pipeline_mode = #tpu.pipeline_mode<synchronous>, transform_indices = @transform_1, window_bounds = array<i64: 32, 96>}, {pipeline_mode = #tpu.pipeline_mode<synchronous>, transform_indices = @transform_2, window_bounds = array<i64: 1, 96>}, {pipeline_mode = #tpu.pipeline_mode<synchronous>, transform_indices = @transform_3, window_bounds = array<i64: 16, 16>}, {pipeline_mode = #tpu.pipeline_mode<synchronous>, transform_indices = @transform_4, window_bounds = array<i64: 16, 32>}]} {
    %c0 = arith.constant 0 : index
    %c0_0 = arith.constant 0 : index
    %0 = vector.load %arg1[%c0, %c0_0] : memref<16x32xf32, #tpu.memory_space<vmem>>, vector<16x32xf32>
    %c0_1 = arith.constant 0 : index
    %c0_2 = arith.constant 0 : index
    %1 = vector.load %arg2[%c0_1, %c0_2] : memref<32x96xf32, #tpu.memory_space<vmem>>, vector<32x96xf32>
    %cst = arith.constant dense<0.000000e+00> : vector<16x96xf32>
    %2 = tpu.matmul %0, %1, %cst {dimension_numbers = #tpu.dot_dimension_numbers<[1], [0], [0], [1], [0, 0, 1, 1], [], []>} : vector<16x32xf32>, vector<32x96xf32>, vector<16x96xf32> -> vector<16x96xf32>
    %c0_3 = arith.constant 0 : index
    %c0_4 = arith.constant 0 : index
    %3 = vector.load %arg3[%c0_3, %c0_4] : memref<1x96xf32, #tpu.memory_space<vmem>>, vector<1x96xf32>
    %4 = vector.broadcast %3 : vector<1x96xf32> to vector<16x96xf32>
    %5 = arith.addf %2, %4 : vector<16x96xf32>
    %c0_5 = arith.constant 0 : index
    %c0_6 = arith.constant 0 : index
    %6 = vector.load %arg4[%c0_5, %c0_6] : memref<16x16xf32, #tpu.memory_space<vmem>>, vector<16x16xf32>
    %7 = vector.extract_strided_slice %5 {offsets = [0, 0], sizes = [16, 8], strides = [1, 1]} : vector<16x96xf32> to vector<16x8xf32>
    %8 = vector.extract_strided_slice %5 {offsets = [0, 32], sizes = [16, 8], strides = [1, 1]} : vector<16x96xf32> to vector<16x8xf32>
    %9 = vector.extract_strided_slice %5 {offsets = [0, 64], sizes = [16, 8], strides = [1, 1]} : vector<16x96xf32> to vector<16x8xf32>
    %cst_7 = arith.constant dense<0.000000e+00> : vector<16x16xf32>
    %10 = tpu.matmul %7, %8, %cst_7 {dimension_numbers = #tpu.dot_dimension_numbers<[1], [1], [0], [0], [0, 0, 1, 0], [], []>} : vector<16x8xf32>, vector<16x8xf32>, vector<16x16xf32> -> vector<16x16xf32>
    %cst_8 = arith.constant 0.353553385 : f32
    %11 = vector.broadcast %cst_8 : f32 to vector<16x16xf32>
    %12 = arith.mulf %10, %11 : vector<16x16xf32>
    %13 = arith.addf %12, %6 : vector<16x16xf32>
    %cst_9 = arith.constant dense<0xFF800000> : vector<16xf32>
    %14 = vector.multi_reduction <maximumf>, %13, %cst_9 [1] : vector<16x16xf32> to vector<16xf32>
    %15 = vector.shape_cast %14 : vector<16xf32> to vector<16x1xf32>
    %16 = vector.broadcast %15 : vector<16x1xf32> to vector<16x16xf32>
    %17 = arith.subf %13, %16 : vector<16x16xf32>
    %18 = math.exp %17 : vector<16x16xf32>
    %cst_10 = arith.constant dense<0.000000e+00> : vector<16xf32>
    %19 = vector.multi_reduction <add>, %18, %cst_10 [1] : vector<16x16xf32> to vector<16xf32>
    %20 = vector.shape_cast %19 : vector<16xf32> to vector<16x1xf32>
    %cst_11 = arith.constant dense<0.000000e+00> : vector<16x8xf32>
    %21 = tpu.matmul %18, %9, %cst_11 {dimension_numbers = #tpu.dot_dimension_numbers<[1], [0], [0], [1], [0, 0, 1, 1], [], []>} : vector<16x16xf32>, vector<16x8xf32>, vector<16x8xf32> -> vector<16x8xf32>
    %22 = tpu.reciprocal %20 : vector<16x1xf32> -> vector<16x1xf32>
    %23 = vector.broadcast %22 : vector<16x1xf32> to vector<16x8xf32>
    %24 = arith.mulf %21, %23 : vector<16x8xf32>
    %25 = vector.extract_strided_slice %5 {offsets = [0, 8], sizes = [16, 8], strides = [1, 1]} : vector<16x96xf32> to vector<16x8xf32>
    %26 = vector.extract_strided_slice %5 {offsets = [0, 40], sizes = [16, 8], strides = [1, 1]} : vector<16x96xf32> to vector<16x8xf32>
    %27 = vector.extract_strided_slice %5 {offsets = [0, 72], sizes = [16, 8], strides = [1, 1]} : vector<16x96xf32> to vector<16x8xf32>
    %cst_12 = arith.constant dense<0.000000e+00> : vector<16x16xf32>
    %28 = tpu.matmul %25, %26, %cst_12 {dimension_numbers = #tpu.dot_dimension_numbers<[1], [1], [0], [0], [0, 0, 1, 0], [], []>} : vector<16x8xf32>, vector<16x8xf32>, vector<16x16xf32> -> vector<16x16xf32>
    %cst_13 = arith.constant 0.353553385 : f32
    %29 = vector.broadcast %cst_13 : f32 to vector<16x16xf32>
    %30 = arith.mulf %28, %29 : vector<16x16xf32>
    %31 = arith.addf %30, %6 : vector<16x16xf32>
    %cst_14 = arith.constant dense<0xFF800000> : vector<16xf32>
    %32 = vector.multi_reduction <maximumf>, %31, %cst_14 [1] : vector<16x16xf32> to vector<16xf32>
    %33 = vector.shape_cast %32 : vector<16xf32> to vector<16x1xf32>
    %34 = vector.broadcast %33 : vector<16x1xf32> to vector<16x16xf32>
    %35 = arith.subf %31, %34 : vector<16x16xf32>
    %36 = math.exp %35 : vector<16x16xf32>
    %cst_15 = arith.constant dense<0.000000e+00> : vector<16xf32>
    %37 = vector.multi_reduction <add>, %36, %cst_15 [1] : vector<16x16xf32> to vector<16xf32>
    %38 = vector.shape_cast %37 : vector<16xf32> to vector<16x1xf32>
    %cst_16 = arith.constant dense<0.000000e+00> : vector<16x8xf32>
    %39 = tpu.matmul %36, %27, %cst_16 {dimension_numbers = #tpu.dot_dimension_numbers<[1], [0], [0], [1], [0, 0, 1, 1], [], []>} : vector<16x16xf32>, vector<16x8xf32>, vector<16x8xf32> -> vector<16x8xf32>
    %40 = tpu.reciprocal %38 : vector<16x1xf32> -> vector<16x1xf32>
    %41 = vector.broadcast %40 : vector<16x1xf32> to vector<16x8xf32>
    %42 = arith.mulf %39, %41 : vector<16x8xf32>
    %43 = vector.extract_strided_slice %5 {offsets = [0, 16], sizes = [16, 8], strides = [1, 1]} : vector<16x96xf32> to vector<16x8xf32>
    %44 = vector.extract_strided_slice %5 {offsets = [0, 48], sizes = [16, 8], strides = [1, 1]} : vector<16x96xf32> to vector<16x8xf32>
    %45 = vector.extract_strided_slice %5 {offsets = [0, 80], sizes = [16, 8], strides = [1, 1]} : vector<16x96xf32> to vector<16x8xf32>
    %cst_17 = arith.constant dense<0.000000e+00> : vector<16x16xf32>
    %46 = tpu.matmul %43, %44, %cst_17 {dimension_numbers = #tpu.dot_dimension_numbers<[1], [1], [0], [0], [0, 0, 1, 0], [], []>} : vector<16x8xf32>, vector<16x8xf32>, vector<16x16xf32> -> vector<16x16xf32>
    %cst_18 = arith.constant 0.353553385 : f32
    %47 = vector.broadcast %cst_18 : f32 to vector<16x16xf32>
    %48 = arith.mulf %46, %47 : vector<16x16xf32>
    %49 = arith.addf %48, %6 : vector<16x16xf32>
    %cst_19 = arith.constant dense<0xFF800000> : vector<16xf32>
    %50 = vector.multi_reduction <maximumf>, %49, %cst_19 [1] : vector<16x16xf32> to vector<16xf32>
    %51 = vector.shape_cast %50 : vector<16xf32> to vector<16x1xf32>
    %52 = vector.broadcast %51 : vector<16x1xf32> to vector<16x16xf32>
    %53 = arith.subf %49, %52 : vector<16x16xf32>
    %54 = math.exp %53 : vector<16x16xf32>
    %cst_20 = arith.constant dense<0.000000e+00> : vector<16xf32>
    %55 = vector.multi_reduction <add>, %54, %cst_20 [1] : vector<16x16xf32> to vector<16xf32>
    %56 = vector.shape_cast %55 : vector<16xf32> to vector<16x1xf32>
    %cst_21 = arith.constant dense<0.000000e+00> : vector<16x8xf32>
    %57 = tpu.matmul %54, %45, %cst_21 {dimension_numbers = #tpu.dot_dimension_numbers<[1], [0], [0], [1], [0, 0, 1, 1], [], []>} : vector<16x16xf32>, vector<16x8xf32>, vector<16x8xf32> -> vector<16x8xf32>
    %58 = tpu.reciprocal %56 : vector<16x1xf32> -> vector<16x1xf32>
    %59 = vector.broadcast %58 : vector<16x1xf32> to vector<16x8xf32>
    %60 = arith.mulf %57, %59 : vector<16x8xf32>
    %61 = vector.extract_strided_slice %5 {offsets = [0, 24], sizes = [16, 8], strides = [1, 1]} : vector<16x96xf32> to vector<16x8xf32>
    %62 = vector.extract_strided_slice %5 {offsets = [0, 56], sizes = [16, 8], strides = [1, 1]} : vector<16x96xf32> to vector<16x8xf32>
    %63 = vector.extract_strided_slice %5 {offsets = [0, 88], sizes = [16, 8], strides = [1, 1]} : vector<16x96xf32> to vector<16x8xf32>
    %cst_22 = arith.constant dense<0.000000e+00> : vector<16x16xf32>
    %64 = tpu.matmul %61, %62, %cst_22 {dimension_numbers = #tpu.dot_dimension_numbers<[1], [1], [0], [0], [0, 0, 1, 0], [], []>} : vector<16x8xf32>, vector<16x8xf32>, vector<16x16xf32> -> vector<16x16xf32>
    %cst_23 = arith.constant 0.353553385 : f32
    %65 = vector.broadcast %cst_23 : f32 to vector<16x16xf32>
    %66 = arith.mulf %64, %65 : vector<16x16xf32>
    %67 = arith.addf %66, %6 : vector<16x16xf32>
    %cst_24 = arith.constant dense<0xFF800000> : vector<16xf32>
    %68 = vector.multi_reduction <maximumf>, %67, %cst_24 [1] : vector<16x16xf32> to vector<16xf32>
    %69 = vector.shape_cast %68 : vector<16xf32> to vector<16x1xf32>
    %70 = vector.broadcast %69 : vector<16x1xf32> to vector<16x16xf32>
    %71 = arith.subf %67, %70 : vector<16x16xf32>
    %72 = math.exp %71 : vector<16x16xf32>
    %cst_25 = arith.constant dense<0.000000e+00> : vector<16xf32>
    %73 = vector.multi_reduction <add>, %72, %cst_25 [1] : vector<16x16xf32> to vector<16xf32>
    %74 = vector.shape_cast %73 : vector<16xf32> to vector<16x1xf32>
    %cst_26 = arith.constant dense<0.000000e+00> : vector<16x8xf32>
    %75 = tpu.matmul %72, %63, %cst_26 {dimension_numbers = #tpu.dot_dimension_numbers<[1], [0], [0], [1], [0, 0, 1, 1], [], []>} : vector<16x16xf32>, vector<16x8xf32>, vector<16x8xf32> -> vector<16x8xf32>
    %76 = tpu.reciprocal %74 : vector<16x1xf32> -> vector<16x1xf32>
    %77 = vector.broadcast %76 : vector<16x1xf32> to vector<16x8xf32>
    %78 = arith.mulf %75, %77 : vector<16x8xf32>
    %79 = tpu.concatenate %24, %42, %60, %78 in 1 : vector<16x8xf32>, vector<16x8xf32>, vector<16x8xf32>, vector<16x8xf32> -> vector<16x32xf32>
    %c0_27 = arith.constant 0 : index
    %c0_28 = arith.constant 0 : index
    %80 = vector.load %arg5[%c0_27, %c0_28] : memref<16x32xf32, #tpu.memory_space<vmem>>, vector<16x32xf32>
    tpu.vector_store %arg5[%c0_27, %c0_28], %79 {strides = array<i32>} : memref<16x32xf32, #tpu.memory_space<vmem>>, vector<16x32xf32>,
    return
  }
  func.func @transform_0(%arg0: i32) -> (i32, i32) {
    %c0_i32 = arith.constant 0 : i32
    %c0_i32_0 = arith.constant 0 : i32
    %c0_i32_1 = arith.constant 0 : i32
    return %c0_i32, %c0_i32_0 : i32, i32
  }
  func.func @transform_1(%arg0: i32) -> (i32, i32) {
    %c0_i32 = arith.constant 0 : i32
    %c0_i32_0 = arith.constant 0 : i32
    %c0_i32_1 = arith.constant 0 : i32
    return %c0_i32, %c0_i32_0 : i32, i32
  }
  func.func @transform_2(%arg0: i32) -> (i32, i32) {
    %c0_i32 = arith.constant 0 : i32
    %c0_i32_0 = arith.constant 0 : i32
    %c0_i32_1 = arith.constant 0 : i32
    return %c0_i32, %c0_i32_0 : i32, i32
  }
  func.func @transform_3(%arg0: i32) -> (i32, i32) {
    %c0_i32 = arith.constant 0 : i32
    %c0_i32_0 = arith.constant 0 : i32
    %c0_i32_1 = arith.constant 0 : i32
    return %c0_i32, %c0_i32_0 : i32, i32
  }
  func.func @transform_4(%arg0: i32) -> (i32, i32) {
    %c0_i32 = arith.constant 0 : i32
    %c0_i32_0 = arith.constant 0 : i32
    %c0_i32_1 = arith.constant 0 : i32
    return %c0_i32, %c0_i32_0 : i32, i32
  }
}

</mosaic_0001>

<llo_original>
// kernel: bert_sdpa.1
$region0: #{bert_sdpa.1}
  #allocation0 [shape = 'u32[]', space=smem, size = 0x4, offset = 0x4, fixed_abs, tag = 'smem constant byte address 0x4 - core index']
  #allocation1 [shape = 'u32[144,128]{1,0:T(1,128)}', space=vmem, size = 0x12000, scoped, tag = 'internal scratch']
  %s0 = inlined_call_operand.vmem [shape: f32[16,32], index: 0, kind: input, shape index: {}]
  %s1 = inlined_call_operand.vmem [shape: f32[32,96], index: 1, kind: input, shape index: {}]
  %s2 = inlined_call_operand.vmem [shape: f32[1,96], index: 2, kind: input, shape index: {}]
  %s3 = inlined_call_operand.vmem [shape: f32[16,16], index: 3, kind: input, shape index: {}]
  %s4 = inlined_call_operand.hbm [shape: f32[16,32], index: 4, kind: output, shape index: {}]
  %s5 = sld [smem:[#allocation0]]
  $region26: #{bert_sdpa.1} parent=0
    _
  %s7 = ssub.s32 1, %s5
  %s8 = scalar_select 0, %s7, %s5
  $region1: #{bert_sdpa.1} parent=0
    #allocation2 [shape = 'u8[8192]{0}', space=vmem, size = 0x2000, scoped, tag = 'output window, operand 0, single buffered']
    #allocation3 [shape = 's32[1]{0}', space=sflag, size = 0x4, scoped, tag = 'scoped memory for bert_sdpa.1']
    %9 = vsyncpa [#allocation3], 0
    // Predicated region
    $region2: #{bert_sdpa.1} parent=1 // pred_check
      _
    $region3: #{bert_sdpa.1} parent=1 // pred_check_branch
      %11 = sbr.rel (0) target = $region5
    $region4: #{bert_sdpa.1} parent=1 // pred_region
      _
    $region5: #{bert_sdpa.1} parent=1 // pred_fallthru
      _
    // Predicated region
    $region6: #{bert_sdpa.1} parent=1 // pred_check
      _
    $region7: #{bert_sdpa.1} parent=1 // pred_check_branch
      %13 = sbr.rel (0) target = $region9
    $region8: #{bert_sdpa.1} parent=1 // pred_region
      _
    $region9: #{bert_sdpa.1} parent=1 // pred_fallthru
      _
    // Predicated region
    $region10: #{bert_sdpa.1} parent=1 // pred_check
      _
    $region11: #{bert_sdpa.1} parent=1 // pred_check_branch
      %15 = sbr.rel (0) target = $region13
    $region12: #{bert_sdpa.1} parent=1 // pred_region
      _
    $region13: #{bert_sdpa.1} parent=1 // pred_fallthru
      _
    // Predicated region
    $region14: #{bert_sdpa.1} parent=1 // pred_check
      _
    $region15: #{bert_sdpa.1} parent=1 // pred_check_branch
      %17 = sbr.rel (0) target = $region17
    $region16: #{bert_sdpa.1} parent=1 // pred_region
      _
    $region17: #{bert_sdpa.1} parent=1 // pred_fallthru
      _
    %v18 = vld [vmem:[%s0] sm:$0xff]
    %v19 = vld [vmem:[%s0 + $0x8] sm:$0xff]
    %v20 = vld [vmem:[%s1] sm:$0xff]
    %v21 = vld [vmem:[%s1 + $0x8] sm:$0xff]
    %v22 = vld [vmem:[%s1 + $0x10] sm:$0xff]
    %v23 = vld [vmem:[%s1 + $0x18] sm:$0xff]
    %v24 = vld [vmem:[%s2] sm:$0x1]
    %v26 = vlaneseq
    %v27 = vshrl.u32 %v26, 7
    %v28 = vsub.s32 0, %v27
    %v29 = vrot.slane %v24, %v28
    %vm31 = vcmask 261120
    %v33 = vsel %vm31, %v18, 0
    %v36 = vsel %vm31, %v19, 0
    %38 = vmatprep.subr.mxu0 0.0
    %39 = vmatpush1.msra.mxu0 %v20
    %40 = vmatprep.subr.mxu0 0.0
    %41 = vmatpush1.msra.mxu0 %v21
    %42 = vmatprep.subr.mxu0 0.0
    %43 = vmatpush1.msra.mxu0 %v22
    %44 = vmatprep.subr.mxu0 0.0
    %45 = vmatpush1.msra.mxu0 %v23
    %46 = vmatprep.subr.mxu0 0.0
    %47 = vmatpush1.msra.mxu0 0.0
    %48 = vmatprep.subr.mxu0 0.0
    %49 = vmatpush1.msra.mxu0 0.0
    %50 = vmatprep.subr.mxu0 0.0
    %51 = vmatpush1.msra.mxu0 0.0
    %52 = vmatprep.subr.mxu0 0.0
    %53 = vmatpush1.msra.mxu0 0.0
    %54 = vmatprep.subr.mxu0 0.0
    %55 = vmatpush1.msra.mxu0 0.0
    %56 = vmatprep.subr.mxu0 0.0
    %57 = vmatpush1.msra.mxu0 0.0
    %58 = vmatprep.subr.mxu0 0.0
    %59 = vmatpush1.msra.mxu0 0.0
    %60 = vmatprep.subr.mxu0 0.0
    %61 = vmatpush1.msra.mxu0 0.0
    %62 = vmatprep.subr.mxu0 0.0
    %63 = vmatpush1.msra.mxu0 0.0
    %64 = vmatprep.subr.mxu0 0.0
    %65 = vmatpush1.msra.mxu0 0.0
    %66 = vmatprep.subr.mxu0 0.0
    %67 = vmatpush1.msra.mxu0 0.0
    %68 = vmatprep.subr.mxu0 0.0
    %69 = vmatpush1.msra.mxu0 0.0
    %70 = vmatprep.subr.mxu0 0.0
    %71 = vmatpush1.msra.mxu0 0.0
    %72 = vmatprep.subr.mxu0 0.0
    %73 = vmatpush1.msra.mxu0 0.0
    %74 = vmatprep.subr.mxu0 0.0
    %75 = vmatpush1.msra.mxu0 0.0
    %76 = vmatprep.subr.mxu0 0.0
    %77 = vmatpush1.msra.mxu0 0.0
    %78 = vmatprep.subr.mxu0 0.0
    %79 = vmatpush1.msra.mxu0 0.0
    %80 = vmatprep.subr.mxu0 0.0
    %81 = vmatpush1.msra.mxu0 0.0
    %82 = vmatprep.subr.mxu0 0.0
    %83 = vmatpush1.msra.mxu0 0.0
    %84 = vmatprep.subr.mxu0 0.0
    %85 = vmatpush1.msra.mxu0 0.0
    %86 = vmatprep.subr.mxu0 0.0
    %87 = vmatpush1.msra.mxu0 0.0
    %88 = vmatprep.subr.mxu0 0.0
    %89 = vmatpush1.msra.mxu0 0.0
    %90 = vmatprep.subr.mxu0 0.0
    %91 = vmatpush1.msra.mxu0 0.0
    %92 = vmatprep.subr.mxu0 0.0
    %93 = vmatpush1.msra.mxu0 0.0
    %94 = vmatprep.subr.mxu0 0.0
    %95 = vmatpush1.msra.mxu0 0.0
    %96 = vmatprep.subr.mxu0 0.0
    %97 = vmatpush1.msra.mxu0 0.0
    %98 = vmatprep.subr.mxu0 0.0
    %99 = vmatpush1.msra.mxu0 0.0
    %100 = vmatprep.subr.mxu0 0.0
    %101 = vmatpush1.msra.mxu0 0.0
    %102 = vmatprep.mubr.f32.mxu0 0.0
    %103 = vmatmul.mubr.f32.gmra.mrb[0].mxu0 %v33
    %v104 = vpop.f32.mrb[0].mxu0
    %v105 = vadd.f32 %v29, %v104
    %v106 = vpop.f32.mrb[0].mxu0
    %107 = vmatprep.mubr.f32.mxu0 0.0
    %108 = vmatmul.mubr.f32.gmra.mrb[0].mxu0 %v36
    %v109 = vpop.f32.mrb[0].mxu0
    %v110 = vadd.f32 %v29, %v109
    %v111 = vpop.f32.mrb[0].mxu0
    %112 = vdwg.mxu0
    %v113 = vld [vmem:[%s3] sm:$0xff]
    %v114 = vld [vmem:[%s3 + $0x8] sm:$0xff]
    %117 = vrot.lane.b32.xlu0 %v105, 96
    %v118 = vpop.permute.xlu0 %117
    %119 = vrot.lane.b32.xlu0 %v110, 96
    %v120 = vpop.permute.xlu0 %119
    %vm121 = vcmask 64512
    %v122 = vsel %vm121, %v105, 0
    %v124 = vsel %vm121, %v110, 0
    %v126 = vsel %vm121, %v118, 0
    %v128 = vsel %vm121, %v120, 0
    %130 = vmatprep.subr.mxu0 0.0
    %131 = vmatpush1.xpose.msra.mxu0 %v126
    %132 = vmatprep.subr.mxu0 0.0
    %133 = vmatpush1.xpose.msra.mxu0 %v128
    %134 = vmatprep.subr.mxu0 0.0
    %135 = vmatpush1.xpose.msra.mxu0 0.0
    %136 = vmatprep.subr.mxu0 0.0
    %137 = vmatpush1.xpose.msra.mxu0 0.0
    %138 = vmatprep.subr.mxu0 0.0
    %139 = vmatpush1.xpose.msra.mxu0 0.0
    %140 = vmatprep.subr.mxu0 0.0
    %141 = vmatpush1.xpose.msra.mxu0 0.0
    %142 = vmatprep.subr.mxu0 0.0
    %143 = vmatpush1.xpose.msra.mxu0 0.0
    %144 = vmatprep.subr.mxu0 0.0
    %145 = vmatpush1.xpose.msra.mxu0 0.0
    %146 = vmatprep.subr.mxu0 0.0
    %147 = vmatpush1.xpose.msra.mxu0 0.0
    %148 = vmatprep.subr.mxu0 0.0
    %149 = vmatpush1.xpose.msra.mxu0 0.0
    %150 = vmatprep.subr.mxu0 0.0
    %151 = vmatpush1.xpose.msra.mxu0 0.0
    %152 = vmatprep.subr.mxu0 0.0
    %153 = vmatpush1.xpose.msra.mxu0 0.0
    %154 = vmatprep.subr.mxu0 0.0
    %155 = vmatpush1.xpose.msra.mxu0 0.0
    %156 = vmatprep.subr.mxu0 0.0
    %157 = vmatpush1.xpose.msra.mxu0 0.0
    %158 = vmatprep.subr.mxu0 0.0
    %159 = vmatpush1.xpose.msra.mxu0 0.0
    %160 = vmatprep.subr.mxu0 0.0
    %161 = vmatpush1.xpose.msra.mxu0 0.0
    %162 = vmatprep.subr.mxu0 0.0
    %163 = vmatpush1.xpose.msra.mxu0 0.0
    %164 = vmatprep.subr.mxu0 0.0
    %165 = vmatpush1.xpose.msra.mxu0 0.0
    %166 = vmatprep.subr.mxu0 0.0
    %167 = vmatpush1.xpose.msra.mxu0 0.0
    %168 = vmatprep.subr.mxu0 0.0
    %169 = vmatpush1.xpose.msra.mxu0 0.0
    %170 = vmatprep.subr.mxu0 0.0
    %171 = vmatpush1.xpose.msra.mxu0 0.0
    %172 = vmatprep.subr.mxu0 0.0
    %173 = vmatpush1.xpose.msra.mxu0 0.0
    %174 = vmatprep.subr.mxu0 0.0
    %175 = vmatpush1.xpose.msra.mxu0 0.0
    %176 = vmatprep.subr.mxu0 0.0
    %177 = vmatpush1.xpose.msra.mxu0 0.0
    %178 = vmatprep.subr.mxu0 0.0
    %179 = vmatpush1.xpose.msra.mxu0 0.0
    %180 = vmatprep.subr.mxu0 0.0
    %181 = vmatpush1.xpose.msra.mxu0 0.0
    %182 = vmatprep.subr.mxu0 0.0
    %183 = vmatpush1.xpose.msra.mxu0 0.0
    %184 = vmatprep.subr.mxu0 0.0
    %185 = vmatpush1.xpose.msra.mxu0 0.0
    %186 = vmatprep.subr.mxu0 0.0
    %187 = vmatpush1.xpose.msra.mxu0 0.0
    %188 = vmatprep.subr.mxu0 0.0
    %189 = vmatpush1.xpose.msra.mxu0 0.0
    %190 = vmatprep.subr.mxu0 0.0
    %191 = vmatpush1.xpose.msra.mxu0 0.0
    %192 = vmatprep.subr.mxu0 0.0
    %193 = vmatpush1.xpose.msra.mxu0 0.0
    %194 = vmatprep.mubr.f32.mxu0 0.0
    %195 = vmatmul.mubr.f32.gmra.mrb[0].mxu0 %v122
    %v196 = vpop.f32.mrb[0].mxu0
    %v197 = vadd.f32 0.0, %v196
    %v198 = vpop.f32.mrb[0].mxu0
    %199 = vmatprep.mubr.f32.mxu0 0.0
    %200 = vmatmul.mubr.f32.gmra.mrb[0].mxu0 %v124
    %v201 = vpop.f32.mrb[0].mxu0
    %v202 = vadd.f32 0.0, %v201
    %v203 = vpop.f32.mrb[0].mxu0
    %204 = vdwg.mxu0
    %v205 = vmul.f32 %v197, 0.35355338
    %v206 = vmul.f32 %v202, 0.35355338
    %v207 = vadd.f32 %v205, %v113
    %v208 = vadd.f32 %v206, %v114
    %vm209 = vcmask 130048
    %v210 = vsel %vm209, %v207, -inf
    %211 = vmax.xlane.f32.xlu0 %v210
    %v212 = vpop.xlane.xlu0 %211
    %v213 = vsel %vm209, %v208, -inf
    %214 = vmax.xlane.f32.xlu0 %v213
    %v215 = vpop.xlane.xlu0 %214
    %v216 = vsub.f32 %v207, %v212
    %v217 = vsub.f32 %v208, %v215
    %v218 = vmul.f32 %v216, 1.442695
    %v219 = vpow.pop %v218
    %v220 = vmul.f32 %v217, 1.442695
    %v221 = vpow.pop %v220
    %v222 = vsel %vm209, %v219, 0.0
    %223 = vadd.xlane.f32.xlu0 %v222
    %v224 = vpop.xlane.xlu0 %223
    %v225 = vsel %vm209, %v221, 0.0
    %226 = vadd.xlane.f32.xlu0 %v225
    %v227 = vpop.xlane.xlu0 %226
    %228 = vrot.lane.b32.xlu0 %v105, 64
    %v229 = vpop.permute.xlu0 %228
    %230 = vrot.lane.b32.xlu0 %v110, 64
    %v231 = vpop.permute.xlu0 %230
    %v235 = vsel %vm209, %v219, 0
    %v238 = vsel %vm209, %v221, 0
    %240 = vmatprep.subr.mxu0 0.0
    %241 = vmatpush1.msra.mxu0 %v229
    %242 = vmatprep.subr.mxu0 0.0
    %243 = vmatpush1.msra.mxu0 %v231
    %244 = vmatprep.subr.mxu0 0.0
    %245 = vmatpush1.msra.mxu0 0.0
    %246 = vmatprep.subr.mxu0 0.0
    %247 = vmatpush1.msra.mxu0 0.0
    %248 = vmatprep.subr.mxu0 0.0
    %249 = vmatpush1.msra.mxu0 0.0
    %250 = vmatprep.subr.mxu0 0.0
    %251 = vmatpush1.msra.mxu0 0.0
    %252 = vmatprep.subr.mxu0 0.0
    %253 = vmatpush1.msra.mxu0 0.0
    %254 = vmatprep.subr.mxu0 0.0
    %255 = vmatpush1.msra.mxu0 0.0
    %256 = vmatprep.subr.mxu0 0.0
    %257 = vmatpush1.msra.mxu0 0.0
    %258 = vmatprep.subr.mxu0 0.0
    %259 = vmatpush1.msra.mxu0 0.0
    %260 = vmatprep.subr.mxu0 0.0
    %261 = vmatpush1.msra.mxu0 0.0
    %262 = vmatprep.subr.mxu0 0.0
    %263 = vmatpush1.msra.mxu0 0.0
    %264 = vmatprep.subr.mxu0 0.0
    %265 = vmatpush1.msra.mxu0 0.0
    %266 = vmatprep.subr.mxu0 0.0
    %267 = vmatpush1.msra.mxu0 0.0
    %268 = vmatprep.subr.mxu0 0.0
    %269 = vmatpush1.msra.mxu0 0.0
    %270 = vmatprep.subr.mxu0 0.0
    %271 = vmatpush1.msra.mxu0 0.0
    %272 = vmatprep.subr.mxu0 0.0
    %273 = vmatpush1.msra.mxu0 0.0
    %274 = vmatprep.subr.mxu0 0.0
    %275 = vmatpush1.msra.mxu0 0.0
    %276 = vmatprep.subr.mxu0 0.0
    %277 = vmatpush1.msra.mxu0 0.0
    %278 = vmatprep.subr.mxu0 0.0
    %279 = vmatpush1.msra.mxu0 0.0
    %280 = vmatprep.subr.mxu0 0.0
    %281 = vmatpush1.msra.mxu0 0.0
    %282 = vmatprep.subr.mxu0 0.0
    %283 = vmatpush1.msra.mxu0 0.0
    %284 = vmatprep.subr.mxu0 0.0
    %285 = vmatpush1.msra.mxu0 0.0
    %286 = vmatprep.subr.mxu0 0.0
    %287 = vmatpush1.msra.mxu0 0.0
    %288 = vmatprep.subr.mxu0 0.0
    %289 = vmatpush1.msra.mxu0 0.0
    %290 = vmatprep.subr.mxu0 0.0
    %291 = vmatpush1.msra.mxu0 0.0
    %292 = vmatprep.subr.mxu0 0.0
    %293 = vmatpush1.msra.mxu0 0.0
    %294 = vmatprep.subr.mxu0 0.0
    %295 = vmatpush1.msra.mxu0 0.0
    %296 = vmatprep.subr.mxu0 0.0
    %297 = vmatpush1.msra.mxu0 0.0
    %298 = vmatprep.subr.mxu0 0.0
    %299 = vmatpush1.msra.mxu0 0.0
    %300 = vmatprep.subr.mxu0 0.0
    %301 = vmatpush1.msra.mxu0 0.0
    %302 = vmatprep.subr.mxu0 0.0
    %303 = vmatpush1.msra.mxu0 0.0
    %304 = vmatprep.mubr.f32.mxu0 0.0
    %305 = vmatmul.mubr.f32.gmra.mrb[0].mxu0 %v235
    %v306 = vpop.f32.mrb[0].mxu0
    %v307 = vadd.f32 0.0, %v306
    %v308 = vpop.f32.mrb[0].mxu0
    %309 = vmatprep.mubr.f32.mxu0 0.0
    %310 = vmatmul.mubr.f32.gmra.mrb[0].mxu0 %v238
    %v311 = vpop.f32.mrb[0].mxu0
    %v312 = vadd.f32 0.0, %v311
    %v313 = vpop.f32.mrb[0].mxu0
    %314 = vdwg.mxu0
    %v315 = vrcp.pop %v224
    %v316 = vrcp.pop %v227
    %v317 = vmul.f32 %v307, %v315
    %v318 = vmul.f32 %v312, %v316
    %319 = vrot.lane.b32.xlu0 %v105, 120
    %v320 = vpop.permute.xlu0 %319
    %321 = vrot.lane.b32.xlu0 %v110, 120
    %v322 = vpop.permute.xlu0 %321
    %323 = vrot.lane.b32.xlu0 %v105, 88
    %v324 = vpop.permute.xlu0 %323
    %325 = vrot.lane.b32.xlu0 %v110, 88
    %v326 = vpop.permute.xlu0 %325
    %v327 = vsel %vm121, %v320, 0
    %v329 = vsel %vm121, %v322, 0
    %v331 = vsel %vm121, %v324, 0
    %v333 = vsel %vm121, %v326, 0
    %335 = vmatprep.subr.mxu0 0.0
    %336 = vmatpush1.xpose.msra.mxu0 %v331
    %337 = vmatprep.subr.mxu0 0.0
    %338 = vmatpush1.xpose.msra.mxu0 %v333
    %339 = vmatprep.subr.mxu0 0.0
    %340 = vmatpush1.xpose.msra.mxu0 0.0
    %341 = vmatprep.subr.mxu0 0.0
    %342 = vmatpush1.xpose.msra.mxu0 0.0
    %343 = vmatprep.subr.mxu0 0.0
    %344 = vmatpush1.xpose.msra.mxu0 0.0
    %345 = vmatprep.subr.mxu0 0.0
    %346 = vmatpush1.xpose.msra.mxu0 0.0
    %347 = vmatprep.subr.mxu0 0.0
    %348 = vmatpush1.xpose.msra.mxu0 0.0
    %349 = vmatprep.subr.mxu0 0.0
    %350 = vmatpush1.xpose.msra.mxu0 0.0
    %351 = vmatprep.subr.mxu0 0.0
    %352 = vmatpush1.xpose.msra.mxu0 0.0
    %353 = vmatprep.subr.mxu0 0.0
    %354 = vmatpush1.xpose.msra.mxu0 0.0
    %355 = vmatprep.subr.mxu0 0.0
    %356 = vmatpush1.xpose.msra.mxu0 0.0
    %357 = vmatprep.subr.mxu0 0.0
    %358 = vmatpush1.xpose.msra.mxu0 0.0
    %359 = vmatprep.subr.mxu0 0.0
    %360 = vmatpush1.xpose.msra.mxu0 0.0
    %361 = vmatprep.subr.mxu0 0.0
    %362 = vmatpush1.xpose.msra.mxu0 0.0
    %363 = vmatprep.subr.mxu0 0.0
    %364 = vmatpush1.xpose.msra.mxu0 0.0
    %365 = vmatprep.subr.mxu0 0.0
    %366 = vmatpush1.xpose.msra.mxu0 0.0
    %367 = vmatprep.subr.mxu0 0.0
    %368 = vmatpush1.xpose.msra.mxu0 0.0
    %369 = vmatprep.subr.mxu0 0.0
    %370 = vmatpush1.xpose.msra.mxu0 0.0
    %371 = vmatprep.subr.mxu0 0.0
    %372 = vmatpush1.xpose.msra.mxu0 0.0
    %373 = vmatprep.subr.mxu0 0.0
    %374 = vmatpush1.xpose.msra.mxu0 0.0
    %375 = vmatprep.subr.mxu0 0.0
    %376 = vmatpush1.xpose.msra.mxu0 0.0
    %377 = vmatprep.subr.mxu0 0.0
    %378 = vmatpush1.xpose.msra.mxu0 0.0
    %379 = vmatprep.subr.mxu0 0.0
    %380 = vmatpush1.xpose.msra.mxu0 0.0
    %381 = vmatprep.subr.mxu0 0.0
    %382 = vmatpush1.xpose.msra.mxu0 0.0
    %383 = vmatprep.subr.mxu0 0.0
    %384 = vmatpush1.xpose.msra.mxu0 0.0
    %385 = vmatprep.subr.mxu0 0.0
    %386 = vmatpush1.xpose.msra.mxu0 0.0
    %387 = vmatprep.subr.mxu0 0.0
    %388 = vmatpush1.xpose.msra.mxu0 0.0
    %389 = vmatprep.subr.mxu0 0.0
    %390 = vmatpush1.xpose.msra.mxu0 0.0
    %391 = vmatprep.subr.mxu0 0.0
    %392 = vmatpush1.xpose.msra.mxu0 0.0
    %393 = vmatprep.subr.mxu0 0.0
    %394 = vmatpush1.xpose.msra.mxu0 0.0
    %395 = vmatprep.subr.mxu0 0.0
    %396 = vmatpush1.xpose.msra.mxu0 0.0
    %397 = vmatprep.subr.mxu0 0.0
    %398 = vmatpush1.xpose.msra.mxu0 0.0
    %399 = vmatprep.mubr.f32.mxu0 0.0
    %400 = vmatmul.mubr.f32.gmra.mrb[0].mxu0 %v327
    %v401 = vpop.f32.mrb[0].mxu0
    %v402 = vadd.f32 0.0, %v401
    %v403 = vpop.f32.mrb[0].mxu0
    %404 = vmatprep.mubr.f32.mxu0 0.0
    %405 = vmatmul.mubr.f32.gmra.mrb[0].mxu0 %v329
    %v406 = vpop.f32.mrb[0].mxu0
    %v407 = vadd.f32 0.0, %v406
    %v408 = vpop.f32.mrb[0].mxu0
    %409 = vdwg.mxu0
    %v410 = vmul.f32 %v402, 0.35355338
    %v411 = vmul.f32 %v407, 0.35355338
    %v412 = vadd.f32 %v410, %v113
    %v413 = vadd.f32 %v411, %v114
    %v414 = vsel %vm209, %v412, -inf
    %415 = vmax.xlane.f32.xlu0 %v414
    %v416 = vpop.xlane.xlu0 %415
    %v417 = vsel %vm209, %v413, -inf
    %418 = vmax.xlane.f32.xlu0 %v417
    %v419 = vpop.xlane.xlu0 %418
    %v420 = vsub.f32 %v412, %v416
    %v421 = vsub.f32 %v413, %v419
    %v422 = vmul.f32 %v420, 1.442695
    %v423 = vpow.pop %v422
    %v424 = vmul.f32 %v421, 1.442695
    %v425 = vpow.pop %v424
    %v426 = vsel %vm209, %v423, 0.0
    %427 = vadd.xlane.f32.xlu0 %v426
    %v428 = vpop.xlane.xlu0 %427
    %v429 = vsel %vm209, %v425, 0.0
    %430 = vadd.xlane.f32.xlu0 %v429
    %v431 = vpop.xlane.xlu0 %430
    %432 = vrot.lane.b32.xlu0 %v105, 56
    %v433 = vpop.permute.xlu0 %432
    %434 = vrot.lane.b32.xlu0 %v110, 56
    %v435 = vpop.permute.xlu0 %434
    %v439 = vsel %vm209, %v423, 0
    %v442 = vsel %vm209, %v425, 0
    %444 = vmatprep.subr.mxu0 0.0
    %445 = vmatpush1.msra.mxu0 %v433
    %446 = vmatprep.subr.mxu0 0.0
    %447 = vmatpush1.msra.mxu0 %v435
    %448 = vmatprep.subr.mxu0 0.0
    %449 = vmatpush1.msra.mxu0 0.0
    %450 = vmatprep.subr.mxu0 0.0
    %451 = vmatpush1.msra.mxu0 0.0
    %452 = vmatprep.subr.mxu0 0.0
    %453 = vmatpush1.msra.mxu0 0.0
    %454 = vmatprep.subr.mxu0 0.0
    %455 = vmatpush1.msra.mxu0 0.0
    %456 = vmatprep.subr.mxu0 0.0
    %457 = vmatpush1.msra.mxu0 0.0
    %458 = vmatprep.subr.mxu0 0.0
    %459 = vmatpush1.msra.mxu0 0.0
    %460 = vmatprep.subr.mxu0 0.0
    %461 = vmatpush1.msra.mxu0 0.0
    %462 = vmatprep.subr.mxu0 0.0
    %463 = vmatpush1.msra.mxu0 0.0
    %464 = vmatprep.subr.mxu0 0.0
    %465 = vmatpush1.msra.mxu0 0.0
    %466 = vmatprep.subr.mxu0 0.0
    %467 = vmatpush1.msra.mxu0 0.0
    %468 = vmatprep.subr.mxu0 0.0
    %469 = vmatpush1.msra.mxu0 0.0
    %470 = vmatprep.subr.mxu0 0.0
    %471 = vmatpush1.msra.mxu0 0.0
    %472 = vmatprep.subr.mxu0 0.0
    %473 = vmatpush1.msra.mxu0 0.0
    %474 = vmatprep.subr.mxu0 0.0
    %475 = vmatpush1.msra.mxu0 0.0
    %476 = vmatprep.subr.mxu0 0.0
    %477 = vmatpush1.msra.mxu0 0.0
    %478 = vmatprep.subr.mxu0 0.0
    %479 = vmatpush1.msra.mxu0 0.0
    %480 = vmatprep.subr.mxu0 0.0
    %481 = vmatpush1.msra.mxu0 0.0
    %482 = vmatprep.subr.mxu0 0.0
    %483 = vmatpush1.msra.mxu0 0.0
    %484 = vmatprep.subr.mxu0 0.0
    %485 = vmatpush1.msra.mxu0 0.0
    %486 = vmatprep.subr.mxu0 0.0
    %487 = vmatpush1.msra.mxu0 0.0
    %488 = vmatprep.subr.mxu0 0.0
    %489 = vmatpush1.msra.mxu0 0.0
    %490 = vmatprep.subr.mxu0 0.0
    %491 = vmatpush1.msra.mxu0 0.0
    %492 = vmatprep.subr.mxu0 0.0
    %493 = vmatpush1.msra.mxu0 0.0
    %494 = vmatprep.subr.mxu0 0.0
    %495 = vmatpush1.msra.mxu0 0.0
    %496 = vmatprep.subr.mxu0 0.0
    %497 = vmatpush1.msra.mxu0 0.0
    %498 = vmatprep.subr.mxu0 0.0
    %499 = vmatpush1.msra.mxu0 0.0
    %500 = vmatprep.subr.mxu0 0.0
    %501 = vmatpush1.msra.mxu0 0.0
    %502 = vmatprep.subr.mxu0 0.0
    %503 = vmatpush1.msra.mxu0 0.0
    %504 = vmatprep.subr.mxu0 0.0
    %505 = vmatpush1.msra.mxu0 0.0
    %506 = vmatprep.subr.mxu0 0.0
    %507 = vmatpush1.msra.mxu0 0.0
    %508 = vmatprep.mubr.f32.mxu0 0.0
    %509 = vmatmul.mubr.f32.gmra.mrb[0].mxu0 %v439
    %v510 = vpop.f32.mrb[0].mxu0
    %v511 = vadd.f32 0.0, %v510
    %v512 = vpop.f32.mrb[0].mxu0
    %513 = vmatprep.mubr.f32.mxu0 0.0
    %514 = vmatmul.mubr.f32.gmra.mrb[0].mxu0 %v442
    %v515 = vpop.f32.mrb[0].mxu0
    %v516 = vadd.f32 0.0, %v515
    %v517 = vpop.f32.mrb[0].mxu0
    %518 = vdwg.mxu0
    %v519 = vrcp.pop %v428
    %v520 = vrcp.pop %v431
    %v521 = vmul.f32 %v511, %v519
    %v522 = vmul.f32 %v516, %v520
    %523 = vrot.lane.b32.xlu0 %v105, 112
    %v524 = vpop.permute.xlu0 %523
    %525 = vrot.lane.b32.xlu0 %v110, 112
    %v526 = vpop.permute.xlu0 %525
    %527 = vrot.lane.b32.xlu0 %v105, 80
    %v528 = vpop.permute.xlu0 %527
    %529 = vrot.lane.b32.xlu0 %v110, 80
    %v530 = vpop.permute.xlu0 %529
    %v531 = vsel %vm121, %v524, 0
    %v533 = vsel %vm121, %v526, 0
    %v535 = vsel %vm121, %v528, 0
    %v537 = vsel %vm121, %v530, 0
    %539 = vmatprep.subr.mxu0 0.0
    %540 = vmatpush1.xpose.msra.mxu0 %v535
    %541 = vmatprep.subr.mxu0 0.0
    %542 = vmatpush1.xpose.msra.mxu0 %v537
    %543 = vmatprep.subr.mxu0 0.0
    %544 = vmatpush1.xpose.msra.mxu0 0.0
    %545 = vmatprep.subr.mxu0 0.0
    %546 = vmatpush1.xpose.msra.mxu0 0.0
    %547 = vmatprep.subr.mxu0 0.0
    %548 = vmatpush1.xpose.msra.mxu0 0.0
    %549 = vmatprep.subr.mxu0 0.0
    %550 = vmatpush1.xpose.msra.mxu0 0.0
    %551 = vmatprep.subr.mxu0 0.0
    %552 = vmatpush1.xpose.msra.mxu0 0.0
    %553 = vmatprep.subr.mxu0 0.0
    %554 = vmatpush1.xpose.msra.mxu0 0.0
    %555 = vmatprep.subr.mxu0 0.0
    %556 = vmatpush1.xpose.msra.mxu0 0.0
    %557 = vmatprep.subr.mxu0 0.0
    %558 = vmatpush1.xpose.msra.mxu0 0.0
    %559 = vmatprep.subr.mxu0 0.0
    %560 = vmatpush1.xpose.msra.mxu0 0.0
    %561 = vmatprep.subr.mxu0 0.0
    %562 = vmatpush1.xpose.msra.mxu0 0.0
    %563 = vmatprep.subr.mxu0 0.0
    %564 = vmatpush1.xpose.msra.mxu0 0.0
    %565 = vmatprep.subr.mxu0 0.0
    %566 = vmatpush1.xpose.msra.mxu0 0.0
    %567 = vmatprep.subr.mxu0 0.0
    %568 = vmatpush1.xpose.msra.mxu0 0.0
    %569 = vmatprep.subr.mxu0 0.0
    %570 = vmatpush1.xpose.msra.mxu0 0.0
    %571 = vmatprep.subr.mxu0 0.0
    %572 = vmatpush1.xpose.msra.mxu0 0.0
    %573 = vmatprep.subr.mxu0 0.0
    %574 = vmatpush1.xpose.msra.mxu0 0.0
    %575 = vmatprep.subr.mxu0 0.0
    %576 = vmatpush1.xpose.msra.mxu0 0.0
    %577 = vmatprep.subr.mxu0 0.0
    %578 = vmatpush1.xpose.msra.mxu0 0.0
    %579 = vmatprep.subr.mxu0 0.0
    %580 = vmatpush1.xpose.msra.mxu0 0.0
    %581 = vmatprep.subr.mxu0 0.0
    %582 = vmatpush1.xpose.msra.mxu0 0.0
    %583 = vmatprep.subr.mxu0 0.0
    %584 = vmatpush1.xpose.msra.mxu0 0.0
    %585 = vmatprep.subr.mxu0 0.0
    %586 = vmatpush1.xpose.msra.mxu0 0.0
    %587 = vmatprep.subr.mxu0 0.0
    %588 = vmatpush1.xpose.msra.mxu0 0.0
    %589 = vmatprep.subr.mxu0 0.0
    %590 = vmatpush1.xpose.msra.mxu0 0.0
    %591 = vmatprep.subr.mxu0 0.0
    %592 = vmatpush1.xpose.msra.mxu0 0.0
    %593 = vmatprep.subr.mxu0 0.0
    %594 = vmatpush1.xpose.msra.mxu0 0.0
    %595 = vmatprep.subr.mxu0 0.0
    %596 = vmatpush1.xpose.msra.mxu0 0.0
    %597 = vmatprep.subr.mxu0 0.0
    %598 = vmatpush1.xpose.msra.mxu0 0.0
    %599 = vmatprep.subr.mxu0 0.0
    %600 = vmatpush1.xpose.msra.mxu0 0.0
    %601 = vmatprep.subr.mxu0 0.0
    %602 = vmatpush1.xpose.msra.mxu0 0.0
    %603 = vmatprep.mubr.f32.mxu0 0.0
    %604 = vmatmul.mubr.f32.gmra.mrb[0].mxu0 %v531
    %v605 = vpop.f32.mrb[0].mxu0
    %v606 = vadd.f32 0.0, %v605
    %v607 = vpop.f32.mrb[0].mxu0
    %608 = vmatprep.mubr.f32.mxu0 0.0
    %609 = vmatmul.mubr.f32.gmra.mrb[0].mxu0 %v533
    %v610 = vpop.f32.mrb[0].mxu0
    %v611 = vadd.f32 0.0, %v610
    %v612 = vpop.f32.mrb[0].mxu0
    %613 = vdwg.mxu0
    %v614 = vmul.f32 %v606, 0.35355338
    %v615 = vmul.f32 %v611, 0.35355338
    %v616 = vadd.f32 %v614, %v113
    %v617 = vadd.f32 %v615, %v114
    %v618 = vsel %vm209, %v616, -inf
    %619 = vmax.xlane.f32.xlu0 %v618
    %v620 = vpop.xlane.xlu0 %619
    %v621 = vsel %vm209, %v617, -inf
    %622 = vmax.xlane.f32.xlu0 %v621
    %v623 = vpop.xlane.xlu0 %622
    %v624 = vsub.f32 %v616, %v620
    %v625 = vsub.f32 %v617, %v623
    %v626 = vmul.f32 %v624, 1.442695
    %v627 = vpow.pop %v626
    %v628 = vmul.f32 %v625, 1.442695
    %v629 = vpow.pop %v628
    %v630 = vsel %vm209, %v627, 0.0
    %631 = vadd.xlane.f32.xlu0 %v630
    %v632 = vpop.xlane.xlu0 %631
    %v633 = vsel %vm209, %v629, 0.0
    %634 = vadd.xlane.f32.xlu0 %v633
    %v635 = vpop.xlane.xlu0 %634
    %636 = vrot.lane.b32.xlu0 %v105, 48
    %v637 = vpop.permute.xlu0 %636
    %638 = vrot.lane.b32.xlu0 %v110, 48
    %v639 = vpop.permute.xlu0 %638
    %v643 = vsel %vm209, %v627, 0
    %v646 = vsel %vm209, %v629, 0
    %648 = vmatprep.subr.mxu0 0.0
    %649 = vmatpush1.msra.mxu0 %v637
    %650 = vmatprep.subr.mxu0 0.0
    %651 = vmatpush1.msra.mxu0 %v639
    %652 = vmatprep.subr.mxu0 0.0
    %653 = vmatpush1.msra.mxu0 0.0
    %654 = vmatprep.subr.mxu0 0.0
    %655 = vmatpush1.msra.mxu0 0.0
    %656 = vmatprep.subr.mxu0 0.0
    %657 = vmatpush1.msra.mxu0 0.0
    %658 = vmatprep.subr.mxu0 0.0
    %659 = vmatpush1.msra.mxu0 0.0
    %660 = vmatprep.subr.mxu0 0.0
    %661 = vmatpush1.msra.mxu0 0.0
    %662 = vmatprep.subr.mxu0 0.0
    %663 = vmatpush1.msra.mxu0 0.0
    %664 = vmatprep.subr.mxu0 0.0
    %665 = vmatpush1.msra.mxu0 0.0
    %666 = vmatprep.subr.mxu0 0.0
    %667 = vmatpush1.msra.mxu0 0.0
    %668 = vmatprep.subr.mxu0 0.0
    %669 = vmatpush1.msra.mxu0 0.0
    %670 = vmatprep.subr.mxu0 0.0
    %671 = vmatpush1.msra.mxu0 0.0
    %672 = vmatprep.subr.mxu0 0.0
    %673 = vmatpush1.msra.mxu0 0.0
    %674 = vmatprep.subr.mxu0 0.0
    %675 = vmatpush1.msra.mxu0 0.0
    %676 = vmatprep.subr.mxu0 0.0
    %677 = vmatpush1.msra.mxu0 0.0
    %678 = vmatprep.subr.mxu0 0.0
    %679 = vmatpush1.msra.mxu0 0.0
    %680 = vmatprep.subr.mxu0 0.0
    %681 = vmatpush1.msra.mxu0 0.0
    %682 = vmatprep.subr.mxu0 0.0
    %683 = vmatpush1.msra.mxu0 0.0
    %684 = vmatprep.subr.mxu0 0.0
    %685 = vmatpush1.msra.mxu0 0.0
    %686 = vmatprep.subr.mxu0 0.0
    %687 = vmatpush1.msra.mxu0 0.0
    %688 = vmatprep.subr.mxu0 0.0
    %689 = vmatpush1.msra.mxu0 0.0
    %690 = vmatprep.subr.mxu0 0.0
    %691 = vmatpush1.msra.mxu0 0.0
    %692 = vmatprep.subr.mxu0 0.0
    %693 = vmatpush1.msra.mxu0 0.0
    %694 = vmatprep.subr.mxu0 0.0
    %695 = vmatpush1.msra.mxu0 0.0
    %696 = vmatprep.subr.mxu0 0.0
    %697 = vmatpush1.msra.mxu0 0.0
    %698 = vmatprep.subr.mxu0 0.0
    %699 = vmatpush1.msra.mxu0 0.0
    %700 = vmatprep.subr.mxu0 0.0
    %701 = vmatpush1.msra.mxu0 0.0
    %702 = vmatprep.subr.mxu0 0.0
    %703 = vmatpush1.msra.mxu0 0.0
    %704 = vmatprep.subr.mxu0 0.0
    %705 = vmatpush1.msra.mxu0 0.0
    %706 = vmatprep.subr.mxu0 0.0
    %707 = vmatpush1.msra.mxu0 0.0
    %708 = vmatprep.subr.mxu0 0.0
    %709 = vmatpush1.msra.mxu0 0.0
    %710 = vmatprep.subr.mxu0 0.0
    %711 = vmatpush1.msra.mxu0 0.0
    %712 = vmatprep.mubr.f32.mxu0 0.0
    %713 = vmatmul.mubr.f32.gmra.mrb[0].mxu0 %v643
    %v714 = vpop.f32.mrb[0].mxu0
    %v715 = vadd.f32 0.0, %v714
    %v716 = vpop.f32.mrb[0].mxu0
    %717 = vmatprep.mubr.f32.mxu0 0.0
    %718 = vmatmul.mubr.f32.gmra.mrb[0].mxu0 %v646
    %v719 = vpop.f32.mrb[0].mxu0
    %v720 = vadd.f32 0.0, %v719
    %v721 = vpop.f32.mrb[0].mxu0
    %722 = vdwg.mxu0
    %v723 = vrcp.pop %v632
    %v724 = vrcp.pop %v635
    %v725 = vmul.f32 %v715, %v723
    %v726 = vmul.f32 %v720, %v724
    %727 = vrot.lane.b32.xlu0 %v105, 104
    %v728 = vpop.permute.xlu0 %727
    %729 = vrot.lane.b32.xlu0 %v110, 104
    %v730 = vpop.permute.xlu0 %729
    %731 = vrot.lane.b32.xlu0 %v105, 72
    %v732 = vpop.permute.xlu0 %731
    %733 = vrot.lane.b32.xlu0 %v110, 72
    %v734 = vpop.permute.xlu0 %733
    %v735 = vsel %vm121, %v728, 0
    %v737 = vsel %vm121, %v730, 0
    %v739 = vsel %vm121, %v732, 0
    %v741 = vsel %vm121, %v734, 0
    %743 = vmatprep.subr.mxu0 0.0
    %744 = vmatpush1.xpose.msra.mxu0 %v739
    %745 = vmatprep.subr.mxu0 0.0
    %746 = vmatpush1.xpose.msra.mxu0 %v741
    %747 = vmatprep.subr.mxu0 0.0
    %748 = vmatpush1.xpose.msra.mxu0 0.0
    %749 = vmatprep.subr.mxu0 0.0
    %750 = vmatpush1.xpose.msra.mxu0 0.0
    %751 = vmatprep.subr.mxu0 0.0
    %752 = vmatpush1.xpose.msra.mxu0 0.0
    %753 = vmatprep.subr.mxu0 0.0
    %754 = vmatpush1.xpose.msra.mxu0 0.0
    %755 = vmatprep.subr.mxu0 0.0
    %756 = vmatpush1.xpose.msra.mxu0 0.0
    %757 = vmatprep.subr.mxu0 0.0
    %758 = vmatpush1.xpose.msra.mxu0 0.0
    %759 = vmatprep.subr.mxu0 0.0
    %760 = vmatpush1.xpose.msra.mxu0 0.0
    %761 = vmatprep.subr.mxu0 0.0
    %762 = vmatpush1.xpose.msra.mxu0 0.0
    %763 = vmatprep.subr.mxu0 0.0
    %764 = vmatpush1.xpose.msra.mxu0 0.0
    %765 = vmatprep.subr.mxu0 0.0
    %766 = vmatpush1.xpose.msra.mxu0 0.0
    %767 = vmatprep.subr.mxu0 0.0
    %768 = vmatpush1.xpose.msra.mxu0 0.0
    %769 = vmatprep.subr.mxu0 0.0
    %770 = vmatpush1.xpose.msra.mxu0 0.0
    %771 = vmatprep.subr.mxu0 0.0
    %772 = vmatpush1.xpose.msra.mxu0 0.0
    %773 = vmatprep.subr.mxu0 0.0
    %774 = vmatpush1.xpose.msra.mxu0 0.0
    %775 = vmatprep.subr.mxu0 0.0
    %776 = vmatpush1.xpose.msra.mxu0 0.0
    %777 = vmatprep.subr.mxu0 0.0
    %778 = vmatpush1.xpose.msra.mxu0 0.0
    %779 = vmatprep.subr.mxu0 0.0
    %780 = vmatpush1.xpose.msra.mxu0 0.0
    %781 = vmatprep.subr.mxu0 0.0
    %782 = vmatpush1.xpose.msra.mxu0 0.0
    %783 = vmatprep.subr.mxu0 0.0
    %784 = vmatpush1.xpose.msra.mxu0 0.0
    %785 = vmatprep.subr.mxu0 0.0
    %786 = vmatpush1.xpose.msra.mxu0 0.0
    %787 = vmatprep.subr.mxu0 0.0
    %788 = vmatpush1.xpose.msra.mxu0 0.0
    %789 = vmatprep.subr.mxu0 0.0
    %790 = vmatpush1.xpose.msra.mxu0 0.0
    %791 = vmatprep.subr.mxu0 0.0
    %792 = vmatpush1.xpose.msra.mxu0 0.0
    %793 = vmatprep.subr.mxu0 0.0
    %794 = vmatpush1.xpose.msra.mxu0 0.0
    %795 = vmatprep.subr.mxu0 0.0
    %796 = vmatpush1.xpose.msra.mxu0 0.0
    %797 = vmatprep.subr.mxu0 0.0
    %798 = vmatpush1.xpose.msra.mxu0 0.0
    %799 = vmatprep.subr.mxu0 0.0
    %800 = vmatpush1.xpose.msra.mxu0 0.0
    %801 = vmatprep.subr.mxu0 0.0
    %802 = vmatpush1.xpose.msra.mxu0 0.0
    %803 = vmatprep.subr.mxu0 0.0
    %804 = vmatpush1.xpose.msra.mxu0 0.0
    %805 = vmatprep.subr.mxu0 0.0
    %806 = vmatpush1.xpose.msra.mxu0 0.0
    %807 = vmatprep.mubr.f32.mxu0 0.0
    %808 = vmatmul.mubr.f32.gmra.mrb[0].mxu0 %v735
    %v809 = vpop.f32.mrb[0].mxu0
    %v810 = vadd.f32 0.0, %v809
    %v811 = vpop.f32.mrb[0].mxu0
    %812 = vmatprep.mubr.f32.mxu0 0.0
    %813 = vmatmul.mubr.f32.gmra.mrb[0].mxu0 %v737
    %v814 = vpop.f32.mrb[0].mxu0
    %v815 = vadd.f32 0.0, %v814
    %v816 = vpop.f32.mrb[0].mxu0
    %817 = vdwg.mxu0
    %v818 = vmul.f32 %v810, 0.35355338
    %v819 = vmul.f32 %v815, 0.35355338
    %v820 = vadd.f32 %v818, %v113
    %v821 = vadd.f32 %v819, %v114
    %v822 = vsel %vm209, %v820, -inf
    %823 = vmax.xlane.f32.xlu0 %v822
    %v824 = vpop.xlane.xlu0 %823
    %v825 = vsel %vm209, %v821, -inf
    %826 = vmax.xlane.f32.xlu0 %v825
    %v827 = vpop.xlane.xlu0 %826
    %v828 = vsub.f32 %v820, %v824
    %v829 = vsub.f32 %v821, %v827
    %v830 = vmul.f32 %v828, 1.442695
    %v831 = vpow.pop %v830
    %v832 = vmul.f32 %v829, 1.442695
    %v833 = vpow.pop %v832
    %v834 = vsel %vm209, %v831, 0.0
    %835 = vadd.xlane.f32.xlu0 %v834
    %v836 = vpop.xlane.xlu0 %835
    %v837 = vsel %vm209, %v833, 0.0
    %838 = vadd.xlane.f32.xlu0 %v837
    %v839 = vpop.xlane.xlu0 %838
    %840 = vrot.lane.b32.xlu0 %v105, 40
    %v841 = vpop.permute.xlu0 %840
    %842 = vrot.lane.b32.xlu0 %v110, 40
    %v843 = vpop.permute.xlu0 %842
    %v847 = vsel %vm209, %v831, 0
    %v850 = vsel %vm209, %v833, 0
    %852 = vmatprep.subr.mxu0 0.0
    %853 = vmatpush1.msra.mxu0 %v841
    %854 = vmatprep.subr.mxu0 0.0
    %855 = vmatpush1.msra.mxu0 %v843
    %856 = vmatprep.subr.mxu0 0.0
    %857 = vmatpush1.msra.mxu0 0.0
    %858 = vmatprep.subr.mxu0 0.0
    %859 = vmatpush1.msra.mxu0 0.0
    %860 = vmatprep.subr.mxu0 0.0
    %861 = vmatpush1.msra.mxu0 0.0
    %862 = vmatprep.subr.mxu0 0.0
    %863 = vmatpush1.msra.mxu0 0.0
    %864 = vmatprep.subr.mxu0 0.0
    %865 = vmatpush1.msra.mxu0 0.0
    %866 = vmatprep.subr.mxu0 0.0
    %867 = vmatpush1.msra.mxu0 0.0
    %868 = vmatprep.subr.mxu0 0.0
    %869 = vmatpush1.msra.mxu0 0.0
    %870 = vmatprep.subr.mxu0 0.0
    %871 = vmatpush1.msra.mxu0 0.0
    %872 = vmatprep.subr.mxu0 0.0
    %873 = vmatpush1.msra.mxu0 0.0
    %874 = vmatprep.subr.mxu0 0.0
    %875 = vmatpush1.msra.mxu0 0.0
    %876 = vmatprep.subr.mxu0 0.0
    %877 = vmatpush1.msra.mxu0 0.0
    %878 = vmatprep.subr.mxu0 0.0
    %879 = vmatpush1.msra.mxu0 0.0
    %880 = vmatprep.subr.mxu0 0.0
    %881 = vmatpush1.msra.mxu0 0.0
    %882 = vmatprep.subr.mxu0 0.0
    %883 = vmatpush1.msra.mxu0 0.0
    %884 = vmatprep.subr.mxu0 0.0
    %885 = vmatpush1.msra.mxu0 0.0
    %886 = vmatprep.subr.mxu0 0.0
    %887 = vmatpush1.msra.mxu0 0.0
    %888 = vmatprep.subr.mxu0 0.0
    %889 = vmatpush1.msra.mxu0 0.0
    %890 = vmatprep.subr.mxu0 0.0
    %891 = vmatpush1.msra.mxu0 0.0
    %892 = vmatprep.subr.mxu0 0.0
    %893 = vmatpush1.msra.mxu0 0.0
    %894 = vmatprep.subr.mxu0 0.0
    %895 = vmatpush1.msra.mxu0 0.0
    %896 = vmatprep.subr.mxu0 0.0
    %897 = vmatpush1.msra.mxu0 0.0
    %898 = vmatprep.subr.mxu0 0.0
    %899 = vmatpush1.msra.mxu0 0.0
    %900 = vmatprep.subr.mxu0 0.0
    %901 = vmatpush1.msra.mxu0 0.0
    %902 = vmatprep.subr.mxu0 0.0
    %903 = vmatpush1.msra.mxu0 0.0
    %904 = vmatprep.subr.mxu0 0.0
    %905 = vmatpush1.msra.mxu0 0.0
    %906 = vmatprep.subr.mxu0 0.0
    %907 = vmatpush1.msra.mxu0 0.0
    %908 = vmatprep.subr.mxu0 0.0
    %909 = vmatpush1.msra.mxu0 0.0
    %910 = vmatprep.subr.mxu0 0.0
    %911 = vmatpush1.msra.mxu0 0.0
    %912 = vmatprep.subr.mxu0 0.0
    %913 = vmatpush1.msra.mxu0 0.0
    %914 = vmatprep.subr.mxu0 0.0
    %915 = vmatpush1.msra.mxu0 0.0
    %916 = vmatprep.mubr.f32.mxu0 0.0
    %917 = vmatmul.mubr.f32.gmra.mrb[0].mxu0 %v847
    %v918 = vpop.f32.mrb[0].mxu0
    %v919 = vadd.f32 0.0, %v918
    %v920 = vpop.f32.mrb[0].mxu0
    %921 = vmatprep.mubr.f32.mxu0 0.0
    %922 = vmatmul.mubr.f32.gmra.mrb[0].mxu0 %v850
    %v923 = vpop.f32.mrb[0].mxu0
    %v924 = vadd.f32 0.0, %v923
    %v925 = vpop.f32.mrb[0].mxu0
    %926 = vdwg.mxu0
    %v927 = vrcp.pop %v836
    %v928 = vrcp.pop %v839
    %v929 = vmul.f32 %v919, %v927
    %v930 = vmul.f32 %v924, %v928
    %933 = vrot.lane.b32.xlu0 %v521, 8
    %v934 = vpop.permute.xlu0 %933
    %935 = vrot.lane.b32.xlu0 %v522, 8
    %v936 = vpop.permute.xlu0 %935
    %941 = vrot.lane.b32.xlu0 %v725, 16
    %v942 = vpop.permute.xlu0 %941
    %943 = vrot.lane.b32.xlu0 %v726, 16
    %v944 = vpop.permute.xlu0 %943
    %949 = vrot.lane.b32.xlu0 %v929, 24
    %v950 = vpop.permute.xlu0 %949
    %951 = vrot.lane.b32.xlu0 %v930, 24
    %v952 = vpop.permute.xlu0 %951
    %v955 = vsel %vm121, %v317, %v934
    %v956 = vsel %vm121, %v318, %v936
    %v957 = vsel %vm209, %v955, %v942
    %v958 = vsel %vm209, %v956, %v944
    %vm959 = vcmask 195584
    %v960 = vsel %vm959, %v957, %v950
    %v961 = vsel %vm959, %v958, %v952
    %962 = vst.msk [vmem:[#allocation2] sm:$0xff] %vm31, %v960
    %963 = vst.msk [vmem:[#allocation2 + $0x8] sm:$0xff] %vm31, %v961
    // Predicated region
    $region18: #{bert_sdpa.1} parent=1 // pred_check
      _
    $region19: #{bert_sdpa.1} parent=1 // pred_check_branch
      %965 = sbr.rel (0) target = $region21
    $region20: #{bert_sdpa.1} parent=1 // pred_region
      %s967 = ssub.s32 256, 256
      %968 = vsyncadd [#allocation3], %s967
      %s969 = sshll.u32 [#allocation2], 4
      %s970 = int_to_ptr.vmem [resolvable:$true] %s969
      %975 = dma.vmem_to_hbm [thread:$0]  %s970, 256, %s4, [#allocation3], 128, 128, 8
    $region21: #{bert_sdpa.1} parent=1 // pred_fallthru
      _
    // Predicated region
    $region22: #{bert_sdpa.1} parent=1 // pred_check
      _
    $region23: #{bert_sdpa.1} parent=1 // pred_check_branch
      %977 = sbr.rel (0) target = $region25
    $region24: #{bert_sdpa.1} parent=1 // pred_region
      %978 = dma.done [#allocation3], 256
    $region25: #{bert_sdpa.1} parent=1 // pred_fallthru
      _
    %979 = vsyncpa [#allocation3], 1

</llo_original>
